<compile_context>
chip_gen: v5e
topology: v5e:2x2
jax: 0.10.0
libtpu: 0.0.40
codegen_flags: <defaults>
</compile_context>

<pallas_src>
import jax
import jax.numpy as jnp
from jax.experimental import pallas as pl
from jax.experimental.pallas import tpu as pltpu

IN_RAW = 100 * 19      # 1900 flattened input features
IN_PAD = 15 * 128      # 1920 (lane-aligned)
HID_RAW = 100
HID_PAD = 128          # lane-dense hidden width
OUT_PAD = 128          # lane-dense output slab; real output is column 0


def _round_up(n, m):
    return ((n + m - 1) // m) * m


def mlp_kernel(x_ref, w1_ref, b1_ref, w2_ref, b2_ref, o_ref):
    # x_ref:(TB, 1920)  w1_ref:(1920, 128)  b1_ref:(1, 128)
    # w2_ref:(1, 128)   b2_ref:(1, 1)       o_ref:(TB, 128)
    x = x_ref[...]
    # fc1 on the MXU with f32 accumulation; ReLU on the VPU.
    h = jnp.dot(x, w1_ref[...], preferred_element_type=jnp.float32) + b1_ref[...]
    h = jnp.maximum(h, 0.0)
    # fc2 (N == 1): VPU broadcast-multiply + XLU lane reduction (MXU stays free).
    y = jnp.sum(h * w2_ref[...], axis=-1, keepdims=True) + b2_ref[...]   # (TB, 1)
    y = 1.0 / (1.0 + jnp.exp(-y))                                        # sigmoid
    # Lane-dense store: replicate across 128 lanes; wrapper slices column 0.
    o_ref[...] = jnp.broadcast_to(y, o_ref.shape).astype(o_ref.dtype)


def mlp_forward(x, w1, b1, w2, b2, *, block_b=512, compute_dtype=jnp.float32):
    """x: (B, 100, 19) float32 -> (B, 1) float32.

    w1: (1900, 100), b1: (100,), w2: (100, 1), b2: (1,).
    block_b=512 keeps 2x double-buffered x tiles + resident weights well under
    the v5e 16 MiB scoped-VMEM default (and trivially under v6e/v7x).
    """
    B = x.shape[0]
    x_flat = x.reshape(B, IN_RAW).astype(jnp.float32)

    # Batch tile: multiple of 16 (sublane-safe for both f32 and bf16).
    tb = _round_up(min(block_b, _round_up(B, 16)), 16)
    b_pad = _round_up(B, tb)
    num_tiles = b_pad // tb

    # Zero-pad to aligned shapes (padding is zeros in x, w1, b1, w2, so ReLU and
    # the reduction are numerically unchanged).
    x_p = jnp.zeros((b_pad, IN_PAD), jnp.float32).at[:B, :IN_RAW].set(x_flat)
    w1_p = jnp.zeros((IN_PAD, HID_PAD), jnp.float32).at[:IN_RAW, :HID_RAW].set(w1)
    b1_p = jnp.zeros((1, HID_PAD), jnp.float32).at[0, :HID_RAW].set(b1)
    w2_p = jnp.zeros((1, HID_PAD), jnp.float32).at[0, :HID_RAW].set(w2[:, 0])
    b2_p = b2.reshape(1, 1).astype(jnp.float32)

    # Optional bf16 compute path (halves x HBM traffic on v6e/v7x).
    x_p = x_p.astype(compute_dtype)
    w1_p = w1_p.astype(compute_dtype)

    out_pad = pl.pallas_call(
        mlp_kernel,
        out_shape=jax.ShapeDtypeStruct((b_pad, OUT_PAD), jnp.float32),
        grid=(num_tiles,),
        in_specs=[
            pl.BlockSpec((tb, IN_PAD), lambda i: (i, 0)),        # x: tiled on batch
            pl.BlockSpec((IN_PAD, HID_PAD), lambda i: (0, 0)),   # w1: VMEM-resident
            pl.BlockSpec((1, HID_PAD), lambda i: (0, 0)),        # b1
            pl.BlockSpec((1, HID_PAD), lambda i: (0, 0)),        # w2 as a row
            pl.BlockSpec((1, 1), lambda i: (0, 0)),              # b2
        ],
        out_specs=pl.BlockSpec((tb, OUT_PAD), lambda i: (i, 0)),
        compiler_params=pltpu.CompilerParams(
            dimension_semantics=("parallel",)),
    )(x_p, w1_p, b1_p, w2_p, b2_p)

    return out_pad[:B, :1]


def mlp_reference(x, w1, b1, w2, b2):
    """Pure-JAX reference (f32, highest precision)."""
    B = x.shape[0]
    xf = x.reshape(B, -1)
    h = jnp.maximum(
        jnp.dot(xf, w1, precision=jax.lax.Precision.HIGHEST) + b1, 0.0)
    y = jnp.dot(h, w2, precision=jax.lax.Precision.HIGHEST) + b2
    return 1.0 / (1.0 + jnp.exp(-y))


def init_params(key):
    """Mimics torch.nn.Linear default init (uniform +/- 1/sqrt(fan_in))."""
    k1, k2, k3, k4 = jax.random.split(key, 4)
    bound1 = 1.0 / (IN_RAW ** 0.5)
    bound2 = 1.0 / (HID_RAW ** 0.5)
    w1 = jax.random.uniform(k1, (IN_RAW, HID_RAW), jnp.float32, -bound1, bound1)
    b1 = jax.random.uniform(k2, (HID_RAW,), jnp.float32, -bound1, bound1)
    w2 = jax.random.uniform(k3, (HID_RAW, 1), jnp.float32, -bound2, bound2)
    b2 = jax.random.uniform(k4, (1,), jnp.float32, -bound2, bound2)
    return w1, b1, w2, b2


if __name__ == "__main__":
    key = jax.random.PRNGKey(0)
    kx, kp, kx2 = jax.random.split(key, 3)

    w1, b1, w2, b2 = init_params(kp)

    # Small-shape test, single tile, f32.
    B = 8
    x = jax.random.normal(kx, (B, 100, 19), dtype=jnp.float32)
    out = jax.block_until_ready(mlp_forward(x, w1, b1, w2, b2))
    ref = mlp_reference(x, w1, b1, w2, b2)
    assert out.shape == (B, 1)
    assert jnp.allclose(out, ref, atol=1e-4, rtol=1e-4), "f32 mismatch vs reference"

    # Multi-tile test (exercises the batch grid + padded-row trimming).
    B2 = 40
    x2 = jax.random.normal(kx2, (B2, 100, 19), dtype=jnp.float32)
    out2 = jax.block_until_ready(mlp_forward(x2, w1, b1, w2, b2, block_b=16))
    ref2 = mlp_reference(x2, w1, b1, w2, b2)
    assert out2.shape == (B2, 1)
    assert jnp.allclose(out2, ref2, atol=1e-4, rtol=1e-4), "multi-tile mismatch"

    # bf16 compute path (v6e/v7x HBM-traffic optimization) — looser tolerance.
    out_bf16 = jax.block_until_ready(
        mlp_forward(x, w1, b1, w2, b2, compute_dtype=jnp.bfloat16))
    assert jnp.allclose(out_bf16, ref, atol=2e-2), "bf16 mismatch vs reference"

    print("KERNEL_OK")
</pallas_src>

<mosaic_0001>
module attributes {stable_mosaic.version = 11 : i64} {
  func.func @mlp_kernel(%arg0: i32, %arg1: memref<16x1920xf32, #tpu.memory_space<vmem>>, %arg2: memref<1920x128xf32, #tpu.memory_space<vmem>>, %arg3: memref<1x128xf32, #tpu.memory_space<vmem>>, %arg4: memref<1x128xf32, #tpu.memory_space<vmem>>, %arg5: memref<1x1xf32, #tpu.memory_space<vmem>>, %arg6: memref<16x128xf32, #tpu.memory_space<vmem>>) attributes {dimension_semantics = [#tpu.dimension_semantics<parallel>], iteration_bounds = array<i64: 1>, scalar_prefetch = 0 : i64, scratch_operands = 0 : i64, tpu.core_type = #tpu.core_type<tc>, window_params = [{transform_indices = @transform_0, window_bounds = array<i64: 16, 1920>}, {pipeline_mode = #tpu.pipeline_mode<synchronous>, transform_indices = @transform_1, window_bounds = array<i64: 1920, 128>}, {pipeline_mode = #tpu.pipeline_mode<synchronous>, transform_indices = @transform_2, window_bounds = array<i64: 1, 128>}, {pipeline_mode = #tpu.pipeline_mode<synchronous>, transform_indices = @transform_3, window_bounds = array<i64: 1, 128>}, {pipeline_mode = #tpu.pipeline_mode<synchronous>, transform_indices = @transform_4, window_bounds = array<i64: 1, 1>}, {transform_indices = @transform_5, window_bounds = array<i64: 16, 128>}]} {
    %c0 = arith.constant 0 : index
    %c0_0 = arith.constant 0 : index
    %0 = vector.load %arg1[%c0, %c0_0] : memref<16x1920xf32, #tpu.memory_space<vmem>>, vector<16x1920xf32>
    %c0_1 = arith.constant 0 : index
    %c0_2 = arith.constant 0 : index
    %1 = vector.load %arg2[%c0_1, %c0_2] : memref<1920x128xf32, #tpu.memory_space<vmem>>, vector<1920x128xf32>
    %cst = arith.constant dense<0.000000e+00> : vector<16x128xf32>
    %2 = tpu.matmul %0, %1, %cst {dimension_numbers = #tpu.dot_dimension_numbers<[1], [0], [0], [1], [0, 0, 1, 1], [], []>} : vector<16x1920xf32>, vector<1920x128xf32>, vector<16x128xf32> -> vector<16x128xf32>
    %c0_3 = arith.constant 0 : index
    %c0_4 = arith.constant 0 : index
    %3 = vector.load %arg3[%c0_3, %c0_4] : memref<1x128xf32, #tpu.memory_space<vmem>>, vector<1x128xf32>
    %4 = vector.broadcast %3 : vector<1x128xf32> to vector<16x128xf32>
    %5 = arith.addf %2, %4 : vector<16x128xf32>
    %cst_5 = arith.constant 0.000000e+00 : f32
    %6 = vector.broadcast %cst_5 : f32 to vector<16x128xf32>
    %7 = arith.maximumf %5, %6 : vector<16x128xf32>
    %c0_6 = arith.constant 0 : index
    %c0_7 = arith.constant 0 : index
    %8 = vector.load %arg4[%c0_6, %c0_7] : memref<1x128xf32, #tpu.memory_space<vmem>>, vector<1x128xf32>
    %9 = vector.broadcast %8 : vector<1x128xf32> to vector<16x128xf32>
    %10 = arith.mulf %7, %9 : vector<16x128xf32>
    %cst_8 = arith.constant dense<0.000000e+00> : vector<16xf32>
    %11 = vector.multi_reduction <add>, %10, %cst_8 [1] : vector<16x128xf32> to vector<16xf32>
    %12 = vector.shape_cast %11 : vector<16xf32> to vector<16x1xf32>
    %c0_9 = arith.constant 0 : index
    %c0_10 = arith.constant 0 : index
    %13 = vector.load %arg5[%c0_9, %c0_10] : memref<1x1xf32, #tpu.memory_space<vmem>>, vector<1x1xf32>
    %14 = vector.broadcast %13 : vector<1x1xf32> to vector<16x1xf32>
    %15 = arith.addf %12, %14 : vector<16x1xf32>
    %cst_11 = arith.constant 0.000000e+00 : f32
    %16 = vector.broadcast %cst_11 : f32 to vector<16x1xf32>
    %17 = arith.subf %16, %15 : vector<16x1xf32>
    %18 = math.exp %17 : vector<16x1xf32>
    %cst_12 = arith.constant 1.000000e+00 : f32
    %19 = vector.broadcast %cst_12 : f32 to vector<16x1xf32>
    %20 = arith.addf %19, %18 : vector<16x1xf32>
    %cst_13 = arith.constant 1.000000e+00 : f32
    %21 = vector.broadcast %cst_13 : f32 to vector<16x1xf32>
    %22 = arith.divf %21, %20 : vector<16x1xf32>
    %23 = vector.shape_cast %22 : vector<16x1xf32> to vector<16x1xf32>
    %24 = vector.broadcast %23 : vector<16x1xf32> to vector<16x128xf32>
    %c0_14 = arith.constant 0 : index
    %c0_15 = arith.constant 0 : index
    %25 = vector.load %arg6[%c0_14, %c0_15] : memref<16x128xf32, #tpu.memory_space<vmem>>, vector<16x128xf32>
    tpu.vector_store %arg6[%c0_14, %c0_15], %24 {strides = array<i32>} : memref<16x128xf32, #tpu.memory_space<vmem>>, vector<16x128xf32>,
    return
  }
  func.func @transform_0(%arg0: i32) -> (i32, i32) {
    %c0_i32 = arith.constant 0 : i32
    %c0_i32_0 = arith.constant 0 : i32
    return %arg0, %c0_i32 : i32, i32
  }
  func.func @transform_1(%arg0: i32) -> (i32, i32) {
    %c0_i32 = arith.constant 0 : i32
    %c0_i32_0 = arith.constant 0 : i32
    %c0_i32_1 = arith.constant 0 : i32
    return %c0_i32, %c0_i32_0 : i32, i32
  }
  func.func @transform_2(%arg0: i32) -> (i32, i32) {
    %c0_i32 = arith.constant 0 : i32
    %c0_i32_0 = arith.constant 0 : i32
    %c0_i32_1 = arith.constant 0 : i32
    return %c0_i32, %c0_i32_0 : i32, i32
  }
  func.func @transform_3(%arg0: i32) -> (i32, i32) {
    %c0_i32 = arith.constant 0 : i32
    %c0_i32_0 = arith.constant 0 : i32
    %c0_i32_1 = arith.constant 0 : i32
    return %c0_i32, %c0_i32_0 : i32, i32
  }
  func.func @transform_4(%arg0: i32) -> (i32, i32) {
    %c0_i32 = arith.constant 0 : i32
    %c0_i32_0 = arith.constant 0 : i32
    %c0_i32_1 = arith.constant 0 : i32
    return %c0_i32, %c0_i32_0 : i32, i32
  }
  func.func @transform_5(%arg0: i32) -> (i32, i32) {
    %c0_i32 = arith.constant 0 : i32
    %c0_i32_0 = arith.constant 0 : i32
    return %arg0, %c0_i32 : i32, i32
  }
}

</mosaic_0001>

<llo_original>
// kernel: tpu_custom_call.1
$region0: #{tpu_custom_call.1}
  #allocation0 [shape = 'u32[]', space=smem, size = 0x4, offset = 0x4, fixed_abs, tag = 'smem constant byte address 0x4 - core index']
  #allocation1 [shape = 'u32[72,128]{1,0:T(1,128)}', space=vmem, size = 0x9000, scoped, tag = 'internal scratch']
  #allocation2 [shape = 'f32[1,1]{1,0:T(1,128)S(1)}', space=vmem, size = 0x200, scoped, tag = 'scoped memory for tpu_custom_call.1']
  %s0 = inlined_call_operand.hbm [shape: f32[16,1920], index: 0, kind: input, shape index: {}]
  %s1 = inlined_call_operand.hbm [shape: f32[1920,128], index: 1, kind: input, shape index: {}]
  %s2 = inlined_call_operand.vmem [shape: f32[1,128], index: 2, kind: input, shape index: {}]
  %s3 = inlined_call_operand.vmem [shape: f32[1,128], index: 3, kind: input, shape index: {}]
  %s4 = inlined_call_operand.<no memory space> [shape: f32[1,1], index: 4, kind: input, shape index: {}]
  %s5 = inlined_call_operand.hbm [shape: f32[16,128], index: 5, kind: output, shape index: {}]
  %s6 = sld [smem:[#allocation0]]
  $region38: #{tpu_custom_call.1} parent=0
    _
  %s8 = ssub.s32 1, %s6
  %s9 = scalar_select 0, %s8, %s6
  %v10 = vstv %s4
  %11 = vst [vmem:[#allocation2] sm:$0x1] %v10
  $region1: #{tpu_custom_call.1} parent=0
    #allocation3 [shape = 'u8[122880]{0}', space=vmem, size = 0x1e000, scoped, tag = 'input window, operand 0, single buffered']
    #allocation4 [shape = 's32[1]{0}', space=sflag, size = 0x4, scoped, tag = 'scoped memory for tpu_custom_call.1']
    #allocation5 [shape = 's32[1]{0}', space=sflag, size = 0x4, scoped, tag = 'scoped memory for tpu_custom_call.1']
    #allocation6 [shape = 'u8[983040]{0}', space=vmem, size = 0xf0000, scoped, tag = 'input window, operand 1, single buffered']
    #allocation7 [shape = 's32[1]{0}', space=sflag, size = 0x4, scoped, tag = 'scoped memory for tpu_custom_call.1']
    #allocation8 [shape = 'u8[8192]{0}', space=vmem, size = 0x2000, scoped, tag = 'output window, operand 0, single buffered']
    %12 = vsyncpa [#allocation4], 0
    %13 = vsyncpa [#allocation7], 0
    %14 = vsyncpa [#allocation5], 0
    // Predicated region
    $region2: #{tpu_custom_call.1} parent=1 // pred_check
      _
    $region3: #{tpu_custom_call.1} parent=1 // pred_check_branch
      %16 = sbr.rel (0) target = $region5
    $region4: #{tpu_custom_call.1} parent=1 // pred_region
      %18 = vsyncadd [#allocation4], 0
      %s19 = sshll.u32 %s0, 4
      %s20 = int_to_ptr.hbm [resolvable:$true] %s19
      %s21 = sshll.u32 [#allocation3], 4
      %s22 = int_to_ptr.vmem [resolvable:$true] %s21
      %27 = dma.hbm_to_vmem [thread:$0]  %s20, 3840, %s22, [#allocation4], 1920, 1920, 120
    $region5: #{tpu_custom_call.1} parent=1 // pred_fallthru
      _
    // Predicated region
    $region6: #{tpu_custom_call.1} parent=1 // pred_check
      _
    $region7: #{tpu_custom_call.1} parent=1 // pred_check_branch
      %29 = sbr.rel (0) target = $region9
    $region8: #{tpu_custom_call.1} parent=1 // pred_region
      %31 = vsyncadd [#allocation7], 0
      %s32 = sshll.u32 %s1, 4
      %s33 = int_to_ptr.hbm [resolvable:$true] %s32
      %s34 = sshll.u32 [#allocation6], 4
      %s35 = int_to_ptr.vmem [resolvable:$true] %s34
      %40 = dma.hbm_to_vmem [thread:$0]  %s33, 30720, %s35, [#allocation7], 128, 128, 8
    $region9: #{tpu_custom_call.1} parent=1 // pred_fallthru
      _
    // Predicated region
    $region10: #{tpu_custom_call.1} parent=1 // pred_check
      _
    $region11: #{tpu_custom_call.1} parent=1 // pred_check_branch
      %42 = sbr.rel (0) target = $region13
    $region12: #{tpu_custom_call.1} parent=1 // pred_region
      _
    $region13: #{tpu_custom_call.1} parent=1 // pred_fallthru
      _
    // Predicated region
    $region14: #{tpu_custom_call.1} parent=1 // pred_check
      _
    $region15: #{tpu_custom_call.1} parent=1 // pred_check_branch
      %44 = sbr.rel (0) target = $region17
    $region16: #{tpu_custom_call.1} parent=1 // pred_region
      _
    $region17: #{tpu_custom_call.1} parent=1 // pred_fallthru
      _
    // Predicated region
    $region18: #{tpu_custom_call.1} parent=1 // pred_check
      _
    $region19: #{tpu_custom_call.1} parent=1 // pred_check_branch
      %46 = sbr.rel (0) target = $region21
    $region20: #{tpu_custom_call.1} parent=1 // pred_region
      _
    $region21: #{tpu_custom_call.1} parent=1 // pred_fallthru
      _
    // Predicated region
    $region22: #{tpu_custom_call.1} parent=1 // pred_check
      _
    $region23: #{tpu_custom_call.1} parent=1 // pred_check_branch
      %48 = sbr.rel (0) target = $region25
    $region24: #{tpu_custom_call.1} parent=1 // pred_region
      %50 = dma.done [#allocation4], 3840
    $region25: #{tpu_custom_call.1} parent=1 // pred_fallthru
      _
    // Predicated region
    $region26: #{tpu_custom_call.1} parent=1 // pred_check
      _
    $region27: #{tpu_custom_call.1} parent=1 // pred_check_branch
      %52 = sbr.rel (0) target = $region29
    $region28: #{tpu_custom_call.1} parent=1 // pred_region
      %54 = dma.done [#allocation7], 30720
    $region29: #{tpu_custom_call.1} parent=1 // pred_fallthru
      _
    %v55 = vld [vmem:[#allocation3] sm:$0xff]
    %v56 = vld [vmem:[#allocation3 + $0x8] sm:$0xff]
    %v57 = vld [vmem:[#allocation3 + $0x10] sm:$0xff]
    %v58 = vld [vmem:[#allocation3 + $0x18] sm:$0xff]
    %v59 = vld [vmem:[#allocation3 + $0x20] sm:$0xff]
    %v60 = vld [vmem:[#allocation3 + $0x28] sm:$0xff]
    %v61 = vld [vmem:[#allocation3 + $0x30] sm:$0xff]
    %v62 = vld [vmem:[#allocation3 + $0x38] sm:$0xff]
    %v63 = vld [vmem:[#allocation3 + $0x40] sm:$0xff]
    %v64 = vld [vmem:[#allocation3 + $0x48] sm:$0xff]
    %v65 = vld [vmem:[#allocation3 + $0x50] sm:$0xff]
    %v66 = vld [vmem:[#allocation3 + $0x58] sm:$0xff]
    %v67 = vld [vmem:[#allocation3 + $0x60] sm:$0xff]
    %v68 = vld [vmem:[#allocation3 + $0x68] sm:$0xff]
    %v69 = vld [vmem:[#allocation3 + $0x70] sm:$0xff]
    %v70 = vld [vmem:[#allocation3 + $0x78] sm:$0xff]
    %v71 = vld [vmem:[#allocation3 + $0x80] sm:$0xff]
    %v72 = vld [vmem:[#allocation3 + $0x88] sm:$0xff]
    %v73 = vld [vmem:[#allocation3 + $0x90] sm:$0xff]
    %v74 = vld [vmem:[#allocation3 + $0x98] sm:$0xff]
    %v75 = vld [vmem:[#allocation3 + $0xa0] sm:$0xff]
    %v76 = vld [vmem:[#allocation3 + $0xa8] sm:$0xff]
    %v77 = vld [vmem:[#allocation3 + $0xb0] sm:$0xff]
    %v78 = vld [vmem:[#allocation3 + $0xb8] sm:$0xff]
    %v79 = vld [vmem:[#allocation3 + $0xc0] sm:$0xff]
    %v80 = vld [vmem:[#allocation3 + $0xc8] sm:$0xff]
    %v81 = vld [vmem:[#allocation3 + $0xd0] sm:$0xff]
    %v82 = vld [vmem:[#allocation3 + $0xd8] sm:$0xff]
    %v83 = vld [vmem:[#allocation3 + $0xe0] sm:$0xff]
    %v84 = vld [vmem:[#allocation3 + $0xe8] sm:$0xff]
    %v85 = vld [vmem:[#allocation6] sm:$0xff]
    %v86 = vld [vmem:[#allocation6 + $0x8] sm:$0xff]
    %v87 = vld [vmem:[#allocation6 + $0x10] sm:$0xff]
    %v88 = vld [vmem:[#allocation6 + $0x18] sm:$0xff]
    %v89 = vld [vmem:[#allocation6 + $0x20] sm:$0xff]
    %v90 = vld [vmem:[#allocation6 + $0x28] sm:$0xff]
    %v91 = vld [vmem:[#allocation6 + $0x30] sm:$0xff]
    %v92 = vld [vmem:[#allocation6 + $0x38] sm:$0xff]
    %v93 = vld [vmem:[#allocation6 + $0x40] sm:$0xff]
    %v94 = vld [vmem:[#allocation6 + $0x48] sm:$0xff]
    %v95 = vld [vmem:[#allocation6 + $0x50] sm:$0xff]
    %v96 = vld [vmem:[#allocation6 + $0x58] sm:$0xff]
    %v97 = vld [vmem:[#allocation6 + $0x60] sm:$0xff]
    %v98 = vld [vmem:[#allocation6 + $0x68] sm:$0xff]
    %v99 = vld [vmem:[#allocation6 + $0x70] sm:$0xff]
    %v100 = vld [vmem:[#allocation6 + $0x78] sm:$0xff]
    %v101 = vld [vmem:[#allocation6 + $0x80] sm:$0xff]
    %v102 = vld [vmem:[#allocation6 + $0x88] sm:$0xff]
    %v103 = vld [vmem:[#allocation6 + $0x90] sm:$0xff]
    %v104 = vld [vmem:[#allocation6 + $0x98] sm:$0xff]
    %v105 = vld [vmem:[#allocation6 + $0xa0] sm:$0xff]
    %v106 = vld [vmem:[#allocation6 + $0xa8] sm:$0xff]
    %v107 = vld [vmem:[#allocation6 + $0xb0] sm:$0xff]
    %v108 = vld [vmem:[#allocation6 + $0xb8] sm:$0xff]
    %v109 = vld [vmem:[#allocation6 + $0xc0] sm:$0xff]
    %v110 = vld [vmem:[#allocation6 + $0xc8] sm:$0xff]
    %v111 = vld [vmem:[#allocation6 + $0xd0] sm:$0xff]
    %v112 = vld [vmem:[#allocation6 + $0xd8] sm:$0xff]
    %v113 = vld [vmem:[#allocation6 + $0xe0] sm:$0xff]
    %v114 = vld [vmem:[#allocation6 + $0xe8] sm:$0xff]
    %v115 = vld [vmem:[#allocation6 + $0xf0] sm:$0xff]
    %v116 = vld [vmem:[#allocation6 + $0xf8] sm:$0xff]
    %v117 = vld [vmem:[#allocation6 + $0x100] sm:$0xff]
    %v118 = vld [vmem:[#allocation6 + $0x108] sm:$0xff]
    %v119 = vld [vmem:[#allocation6 + $0x110] sm:$0xff]
    %v120 = vld [vmem:[#allocation6 + $0x118] sm:$0xff]
    %v121 = vld [vmem:[#allocation6 + $0x120] sm:$0xff]
    %v122 = vld [vmem:[#allocation6 + $0x128] sm:$0xff]
    %v123 = vld [vmem:[#allocation6 + $0x130] sm:$0xff]
    %v124 = vld [vmem:[#allocation6 + $0x138] sm:$0xff]
    %v125 = vld [vmem:[#allocation6 + $0x140] sm:$0xff]
    %v126 = vld [vmem:[#allocation6 + $0x148] sm:$0xff]
    %v127 = vld [vmem:[#allocation6 + $0x150] sm:$0xff]
    %v128 = vld [vmem:[#allocation6 + $0x158] sm:$0xff]
    %v129 = vld [vmem:[#allocation6 + $0x160] sm:$0xff]
    %v130 = vld [vmem:[#allocation6 + $0x168] sm:$0xff]
    %v131 = vld [vmem:[#allocation6 + $0x170] sm:$0xff]
    %v132 = vld [vmem:[#allocation6 + $0x178] sm:$0xff]
    %v133 = vld [vmem:[#allocation6 + $0x180] sm:$0xff]
    %v134 = vld [vmem:[#allocation6 + $0x188] sm:$0xff]
    %v135 = vld [vmem:[#allocation6 + $0x190] sm:$0xff]
    %v136 = vld [vmem:[#allocation6 + $0x198] sm:$0xff]
    %v137 = vld [vmem:[#allocation6 + $0x1a0] sm:$0xff]
    %v138 = vld [vmem:[#allocation6 + $0x1a8] sm:$0xff]
    %v139 = vld [vmem:[#allocation6 + $0x1b0] sm:$0xff]
    %v140 = vld [vmem:[#allocation6 + $0x1b8] sm:$0xff]
    %v141 = vld [vmem:[#allocation6 + $0x1c0] sm:$0xff]
    %v142 = vld [vmem:[#allocation6 + $0x1c8] sm:$0xff]
    %v143 = vld [vmem:[#allocation6 + $0x1d0] sm:$0xff]
    %v144 = vld [vmem:[#allocation6 + $0x1d8] sm:$0xff]
    %v145 = vld [vmem:[#allocation6 + $0x1e0] sm:$0xff]
    %v146 = vld [vmem:[#allocation6 + $0x1e8] sm:$0xff]
    %v147 = vld [vmem:[#allocation6 + $0x1f0] sm:$0xff]
    %v148 = vld [vmem:[#allocation6 + $0x1f8] sm:$0xff]
    %v149 = vld [vmem:[#allocation6 + $0x200] sm:$0xff]
    %v150 = vld [vmem:[#allocation6 + $0x208] sm:$0xff]
    %v151 = vld [vmem:[#allocation6 + $0x210] sm:$0xff]
    %v152 = vld [vmem:[#allocation6 + $0x218] sm:$0xff]
    %v153 = vld [vmem:[#allocation6 + $0x220] sm:$0xff]
    %v154 = vld [vmem:[#allocation6 + $0x228] sm:$0xff]
    %v155 = vld [vmem:[#allocation6 + $0x230] sm:$0xff]
    %v156 = vld [vmem:[#allocation6 + $0x238] sm:$0xff]
    %v157 = vld [vmem:[#allocation6 + $0x240] sm:$0xff]
    %v158 = vld [vmem:[#allocation6 + $0x248] sm:$0xff]
    %v159 = vld [vmem:[#allocation6 + $0x250] sm:$0xff]
    %v160 = vld [vmem:[#allocation6 + $0x258] sm:$0xff]
    %v161 = vld [vmem:[#allocation6 + $0x260] sm:$0xff]
    %v162 = vld [vmem:[#allocation6 + $0x268] sm:$0xff]
    %v163 = vld [vmem:[#allocation6 + $0x270] sm:$0xff]
    %v164 = vld [vmem:[#allocation6 + $0x278] sm:$0xff]
    %v165 = vld [vmem:[#allocation6 + $0x280] sm:$0xff]
    %v166 = vld [vmem:[#allocation6 + $0x288] sm:$0xff]
    %v167 = vld [vmem:[#allocation6 + $0x290] sm:$0xff]
    %v168 = vld [vmem:[#allocation6 + $0x298] sm:$0xff]
    %v169 = vld [vmem:[#allocation6 + $0x2a0] sm:$0xff]
    %v170 = vld [vmem:[#allocation6 + $0x2a8] sm:$0xff]
    %v171 = vld [vmem:[#allocation6 + $0x2b0] sm:$0xff]
    %v172 = vld [vmem:[#allocation6 + $0x2b8] sm:$0xff]
    %v173 = vld [vmem:[#allocation6 + $0x2c0] sm:$0xff]
    %v174 = vld [vmem:[#allocation6 + $0x2c8] sm:$0xff]
    %v175 = vld [vmem:[#allocation6 + $0x2d0] sm:$0xff]
    %v176 = vld [vmem:[#allocation6 + $0x2d8] sm:$0xff]
    %v177 = vld [vmem:[#allocation6 + $0x2e0] sm:$0xff]
    %v178 = vld [vmem:[#allocation6 + $0x2e8] sm:$0xff]
    %v179 = vld [vmem:[#allocation6 + $0x2f0] sm:$0xff]
    %v180 = vld [vmem:[#allocation6 + $0x2f8] sm:$0xff]
    %v181 = vld [vmem:[#allocation6 + $0x300] sm:$0xff]
    %v182 = vld [vmem:[#allocation6 + $0x308] sm:$0xff]
    %v183 = vld [vmem:[#allocation6 + $0x310] sm:$0xff]
    %v184 = vld [vmem:[#allocation6 + $0x318] sm:$0xff]
    %v185 = vld [vmem:[#allocation6 + $0x320] sm:$0xff]
    %v186 = vld [vmem:[#allocation6 + $0x328] sm:$0xff]
    %v187 = vld [vmem:[#allocation6 + $0x330] sm:$0xff]
    %v188 = vld [vmem:[#allocation6 + $0x338] sm:$0xff]
    %v189 = vld [vmem:[#allocation6 + $0x340] sm:$0xff]
    %v190 = vld [vmem:[#allocation6 + $0x348] sm:$0xff]
    %v191 = vld [vmem:[#allocation6 + $0x350] sm:$0xff]
    %v192 = vld [vmem:[#allocation6 + $0x358] sm:$0xff]
    %v193 = vld [vmem:[#allocation6 + $0x360] sm:$0xff]
    %v194 = vld [vmem:[#allocation6 + $0x368] sm:$0xff]
    %v195 = vld [vmem:[#allocation6 + $0x370] sm:$0xff]
    %v196 = vld [vmem:[#allocation6 + $0x378] sm:$0xff]
    %v197 = vld [vmem:[#allocation6 + $0x380] sm:$0xff]
    %v198 = vld [vmem:[#allocation6 + $0x388] sm:$0xff]
    %v199 = vld [vmem:[#allocation6 + $0x390] sm:$0xff]
    %v200 = vld [vmem:[#allocation6 + $0x398] sm:$0xff]
    %v201 = vld [vmem:[#allocation6 + $0x3a0] sm:$0xff]
    %v202 = vld [vmem:[#allocation6 + $0x3a8] sm:$0xff]
    %v203 = vld [vmem:[#allocation6 + $0x3b0] sm:$0xff]
    %v204 = vld [vmem:[#allocation6 + $0x3b8] sm:$0xff]
    %v205 = vld [vmem:[#allocation6 + $0x3c0] sm:$0xff]
    %v206 = vld [vmem:[#allocation6 + $0x3c8] sm:$0xff]
    %v207 = vld [vmem:[#allocation6 + $0x3d0] sm:$0xff]
    %v208 = vld [vmem:[#allocation6 + $0x3d8] sm:$0xff]
    %v209 = vld [vmem:[#allocation6 + $0x3e0] sm:$0xff]
    %v210 = vld [vmem:[#allocation6 + $0x3e8] sm:$0xff]
    %v211 = vld [vmem:[#allocation6 + $0x3f0] sm:$0xff]
    %v212 = vld [vmem:[#allocation6 + $0x3f8] sm:$0xff]
    %v213 = vld [vmem:[#allocation6 + $0x400] sm:$0xff]
    %v214 = vld [vmem:[#allocation6 + $0x408] sm:$0xff]
    %v215 = vld [vmem:[#allocation6 + $0x410] sm:$0xff]
    %v216 = vld [vmem:[#allocation6 + $0x418] sm:$0xff]
    %v217 = vld [vmem:[#allocation6 + $0x420] sm:$0xff]
    %v218 = vld [vmem:[#allocation6 + $0x428] sm:$0xff]
    %v219 = vld [vmem:[#allocation6 + $0x430] sm:$0xff]
    %v220 = vld [vmem:[#allocation6 + $0x438] sm:$0xff]
    %v221 = vld [vmem:[#allocation6 + $0x440] sm:$0xff]
    %v222 = vld [vmem:[#allocation6 + $0x448] sm:$0xff]
    %v223 = vld [vmem:[#allocation6 + $0x450] sm:$0xff]
    %v224 = vld [vmem:[#allocation6 + $0x458] sm:$0xff]
    %v225 = vld [vmem:[#allocation6 + $0x460] sm:$0xff]
    %v226 = vld [vmem:[#allocation6 + $0x468] sm:$0xff]
    %v227 = vld [vmem:[#allocation6 + $0x470] sm:$0xff]
    %v228 = vld [vmem:[#allocation6 + $0x478] sm:$0xff]
    %v229 = vld [vmem:[#allocation6 + $0x480] sm:$0xff]
    %v230 = vld [vmem:[#allocation6 + $0x488] sm:$0xff]
    %v231 = vld [vmem:[#allocation6 + $0x490] sm:$0xff]
    %v232 = vld [vmem:[#allocation6 + $0x498] sm:$0xff]
    %v233 = vld [vmem:[#allocation6 + $0x4a0] sm:$0xff]
    %v234 = vld [vmem:[#allocation6 + $0x4a8] sm:$0xff]
    %v235 = vld [vmem:[#allocation6 + $0x4b0] sm:$0xff]
    %v236 = vld [vmem:[#allocation6 + $0x4b8] sm:$0xff]
    %v237 = vld [vmem:[#allocation6 + $0x4c0] sm:$0xff]
    %v238 = vld [vmem:[#allocation6 + $0x4c8] sm:$0xff]
    %v239 = vld [vmem:[#allocation6 + $0x4d0] sm:$0xff]
    %v240 = vld [vmem:[#allocation6 + $0x4d8] sm:$0xff]
    %v241 = vld [vmem:[#allocation6 + $0x4e0] sm:$0xff]
    %v242 = vld [vmem:[#allocation6 + $0x4e8] sm:$0xff]
    %v243 = vld [vmem:[#allocation6 + $0x4f0] sm:$0xff]
    %v244 = vld [vmem:[#allocation6 + $0x4f8] sm:$0xff]
    %v245 = vld [vmem:[#allocation6 + $0x500] sm:$0xff]
    %v246 = vld [vmem:[#allocation6 + $0x508] sm:$0xff]
    %v247 = vld [vmem:[#allocation6 + $0x510] sm:$0xff]
    %v248 = vld [vmem:[#allocation6 + $0x518] sm:$0xff]
    %v249 = vld [vmem:[#allocation6 + $0x520] sm:$0xff]
    %v250 = vld [vmem:[#allocation6 + $0x528] sm:$0xff]
    %v251 = vld [vmem:[#allocation6 + $0x530] sm:$0xff]
    %v252 = vld [vmem:[#allocation6 + $0x538] sm:$0xff]
    %v253 = vld [vmem:[#allocation6 + $0x540] sm:$0xff]
    %v254 = vld [vmem:[#allocation6 + $0x548] sm:$0xff]
    %v255 = vld [vmem:[#allocation6 + $0x550] sm:$0xff]
    %v256 = vld [vmem:[#allocation6 + $0x558] sm:$0xff]
    %v257 = vld [vmem:[#allocation6 + $0x560] sm:$0xff]
    %v258 = vld [vmem:[#allocation6 + $0x568] sm:$0xff]
    %v259 = vld [vmem:[#allocation6 + $0x570] sm:$0xff]
    %v260 = vld [vmem:[#allocation6 + $0x578] sm:$0xff]
    %v261 = vld [vmem:[#allocation6 + $0x580] sm:$0xff]
    %v262 = vld [vmem:[#allocation6 + $0x588] sm:$0xff]
    %v263 = vld [vmem:[#allocation6 + $0x590] sm:$0xff]
    %v264 = vld [vmem:[#allocation6 + $0x598] sm:$0xff]
    %v265 = vld [vmem:[#allocation6 + $0x5a0] sm:$0xff]
    %v266 = vld [vmem:[#allocation6 + $0x5a8] sm:$0xff]
    %v267 = vld [vmem:[#allocation6 + $0x5b0] sm:$0xff]
    %v268 = vld [vmem:[#allocation6 + $0x5b8] sm:$0xff]
    %v269 = vld [vmem:[#allocation6 + $0x5c0] sm:$0xff]
    %v270 = vld [vmem:[#allocation6 + $0x5c8] sm:$0xff]
    %v271 = vld [vmem:[#allocation6 + $0x5d0] sm:$0xff]
    %v272 = vld [vmem:[#allocation6 + $0x5d8] sm:$0xff]
    %v273 = vld [vmem:[#allocation6 + $0x5e0] sm:$0xff]
    %v274 = vld [vmem:[#allocation6 + $0x5e8] sm:$0xff]
    %v275 = vld [vmem:[#allocation6 + $0x5f0] sm:$0xff]
    %v276 = vld [vmem:[#allocation6 + $0x5f8] sm:$0xff]
    %v277 = vld [vmem:[#allocation6 + $0x600] sm:$0xff]
    %v278 = vld [vmem:[#allocation6 + $0x608] sm:$0xff]
    %v279 = vld [vmem:[#allocation6 + $0x610] sm:$0xff]
    %v280 = vld [vmem:[#allocation6 + $0x618] sm:$0xff]
    %v281 = vld [vmem:[#allocation6 + $0x620] sm:$0xff]
    %v282 = vld [vmem:[#allocation6 + $0x628] sm:$0xff]
    %v283 = vld [vmem:[#allocation6 + $0x630] sm:$0xff]
    %v284 = vld [vmem:[#allocation6 + $0x638] sm:$0xff]
    %v285 = vld [vmem:[#allocation6 + $0x640] sm:$0xff]
    %v286 = vld [vmem:[#allocation6 + $0x648] sm:$0xff]
    %v287 = vld [vmem:[#allocation6 + $0x650] sm:$0xff]
    %v288 = vld [vmem:[#allocation6 + $0x658] sm:$0xff]
    %v289 = vld [vmem:[#allocation6 + $0x660] sm:$0xff]
    %v290 = vld [vmem:[#allocation6 + $0x668] sm:$0xff]
    %v291 = vld [vmem:[#allocation6 + $0x670] sm:$0xff]
    %v292 = vld [vmem:[#allocation6 + $0x678] sm:$0xff]
    %v293 = vld [vmem:[#allocation6 + $0x680] sm:$0xff]
    %v294 = vld [vmem:[#allocation6 + $0x688] sm:$0xff]
    %v295 = vld [vmem:[#allocation6 + $0x690] sm:$0xff]
    %v296 = vld [vmem:[#allocation6 + $0x698] sm:$0xff]
    %v297 = vld [vmem:[#allocation6 + $0x6a0] sm:$0xff]
    %v298 = vld [vmem:[#allocation6 + $0x6a8] sm:$0xff]
    %v299 = vld [vmem:[#allocation6 + $0x6b0] sm:$0xff]
    %v300 = vld [vmem:[#allocation6 + $0x6b8] sm:$0xff]
    %v301 = vld [vmem:[#allocation6 + $0x6c0] sm:$0xff]
    %v302 = vld [vmem:[#allocation6 + $0x6c8] sm:$0xff]
    %v303 = vld [vmem:[#allocation6 + $0x6d0] sm:$0xff]
    %v304 = vld [vmem:[#allocation6 + $0x6d8] sm:$0xff]
    %v305 = vld [vmem:[#allocation6 + $0x6e0] sm:$0xff]
    %v306 = vld [vmem:[#allocation6 + $0x6e8] sm:$0xff]
    %v307 = vld [vmem:[#allocation6 + $0x6f0] sm:$0xff]
    %v308 = vld [vmem:[#allocation6 + $0x6f8] sm:$0xff]
    %v309 = vld [vmem:[#allocation6 + $0x700] sm:$0xff]
    %v310 = vld [vmem:[#allocation6 + $0x708] sm:$0xff]
    %v311 = vld [vmem:[#allocation6 + $0x710] sm:$0xff]
    %v312 = vld [vmem:[#allocation6 + $0x718] sm:$0xff]
    %v313 = vld [vmem:[#allocation6 + $0x720] sm:$0xff]
    %v314 = vld [vmem:[#allocation6 + $0x728] sm:$0xff]
    %v315 = vld [vmem:[#allocation6 + $0x730] sm:$0xff]
    %v316 = vld [vmem:[#allocation6 + $0x738] sm:$0xff]
    %v317 = vld [vmem:[#allocation6 + $0x740] sm:$0xff]
    %v318 = vld [vmem:[#allocation6 + $0x748] sm:$0xff]
    %v319 = vld [vmem:[#allocation6 + $0x750] sm:$0xff]
    %v320 = vld [vmem:[#allocation6 + $0x758] sm:$0xff]
    %v321 = vld [vmem:[#allocation6 + $0x760] sm:$0xff]
    %v322 = vld [vmem:[#allocation6 + $0x768] sm:$0xff]
    %v323 = vld [vmem:[#allocation6 + $0x770] sm:$0xff]
    %v324 = vld [vmem:[#allocation6 + $0x778] sm:$0xff]
    %v325 = vld [vmem:[%s2] sm:$0x1]
    %v327 = vperm.slane %v325, 0
    %329 = vmatpush.msra.mxu0 %v100
    %330 = vmatpush.msra.mxu0 %v99
    %331 = vmatpush.msra.mxu0 %v98
    %332 = vmatpush.msra.mxu0 %v97
    %333 = vmatpush.msra.mxu0 %v96
    %334 = vmatpush.msra.mxu0 %v95
    %335 = vmatpush.msra.mxu0 %v94
    %336 = vmatpush.msra.mxu0 %v93
    %337 = vmatpush.msra.mxu0 %v92
    %338 = vmatpush.msra.mxu0 %v91
    %339 = vmatpush.msra.mxu0 %v90
    %340 = vmatpush.msra.mxu0 %v89
    %341 = vmatpush.msra.mxu0 %v88
    %342 = vmatpush.msra.mxu0 %v87
    %343 = vmatpush.msra.mxu0 %v86
    %344 = vmatpush.msra.mxu0 %v85
    %345 = vmatmul.f32.gmra.mxu0 %v55
    %v346 = vpop.f32.mrf.mxu0
    %v347 = vadd.f32 %v327, %v346
    %348 = vmatmul.f32.gmra.mxu0 %v70
    %v349 = vpop.f32.mrf.mxu0
    %v350 = vadd.f32 %v327, %v349
    %351 = vdwg.mxu0
    %352 = vmatpush.msra.mxu0 %v116
    %353 = vmatpush.msra.mxu0 %v115
    %354 = vmatpush.msra.mxu0 %v114
    %355 = vmatpush.msra.mxu0 %v113
    %356 = vmatpush.msra.mxu0 %v112
    %357 = vmatpush.msra.mxu0 %v111
    %358 = vmatpush.msra.mxu0 %v110
    %359 = vmatpush.msra.mxu0 %v109
    %360 = vmatpush.msra.mxu0 %v108
    %361 = vmatpush.msra.mxu0 %v107
    %362 = vmatpush.msra.mxu0 %v106
    %363 = vmatpush.msra.mxu0 %v105
    %364 = vmatpush.msra.mxu0 %v104
    %365 = vmatpush.msra.mxu0 %v103
    %366 = vmatpush.msra.mxu0 %v102
    %367 = vmatpush.msra.mxu0 %v101
    %368 = vmatmul.f32.gmra.mxu0 %v56
    %v369 = vpop.f32.mrf.mxu0
    %v370 = vadd.f32 %v347, %v369
    %371 = vmatmul.f32.gmra.mxu0 %v71
    %v372 = vpop.f32.mrf.mxu0
    %v373 = vadd.f32 %v350, %v372
    %374 = vdwg.mxu0
    %375 = vmatpush.msra.mxu0 %v132
    %376 = vmatpush.msra.mxu0 %v131
    %377 = vmatpush.msra.mxu0 %v130
    %378 = vmatpush.msra.mxu0 %v129
    %379 = vmatpush.msra.mxu0 %v128
    %380 = vmatpush.msra.mxu0 %v127
    %381 = vmatpush.msra.mxu0 %v126
    %382 = vmatpush.msra.mxu0 %v125
    %383 = vmatpush.msra.mxu0 %v124
    %384 = vmatpush.msra.mxu0 %v123
    %385 = vmatpush.msra.mxu0 %v122
    %386 = vmatpush.msra.mxu0 %v121
    %387 = vmatpush.msra.mxu0 %v120
    %388 = vmatpush.msra.mxu0 %v119
    %389 = vmatpush.msra.mxu0 %v118
    %390 = vmatpush.msra.mxu0 %v117
    %391 = vmatmul.f32.gmra.mxu0 %v57
    %v392 = vpop.f32.mrf.mxu0
    %v393 = vadd.f32 %v370, %v392
    %394 = vmatmul.f32.gmra.mxu0 %v72
    %v395 = vpop.f32.mrf.mxu0
    %v396 = vadd.f32 %v373, %v395
    %397 = vdwg.mxu0
    %398 = vmatpush.msra.mxu0 %v148
    %399 = vmatpush.msra.mxu0 %v147
    %400 = vmatpush.msra.mxu0 %v146
    %401 = vmatpush.msra.mxu0 %v145
    %402 = vmatpush.msra.mxu0 %v144
    %403 = vmatpush.msra.mxu0 %v143
    %404 = vmatpush.msra.mxu0 %v142
    %405 = vmatpush.msra.mxu0 %v141
    %406 = vmatpush.msra.mxu0 %v140
    %407 = vmatpush.msra.mxu0 %v139
    %408 = vmatpush.msra.mxu0 %v138
    %409 = vmatpush.msra.mxu0 %v137
    %410 = vmatpush.msra.mxu0 %v136
    %411 = vmatpush.msra.mxu0 %v135
    %412 = vmatpush.msra.mxu0 %v134
    %413 = vmatpush.msra.mxu0 %v133
    %414 = vmatmul.f32.gmra.mxu0 %v58
    %v415 = vpop.f32.mrf.mxu0
    %v416 = vadd.f32 %v393, %v415
    %417 = vmatmul.f32.gmra.mxu0 %v73
    %v418 = vpop.f32.mrf.mxu0
    %v419 = vadd.f32 %v396, %v418
    %420 = vdwg.mxu0
    %421 = vmatpush.msra.mxu0 %v164
    %422 = vmatpush.msra.mxu0 %v163
    %423 = vmatpush.msra.mxu0 %v162
    %424 = vmatpush.msra.mxu0 %v161
    %425 = vmatpush.msra.mxu0 %v160
    %426 = vmatpush.msra.mxu0 %v159
    %427 = vmatpush.msra.mxu0 %v158
    %428 = vmatpush.msra.mxu0 %v157
    %429 = vmatpush.msra.mxu0 %v156
    %430 = vmatpush.msra.mxu0 %v155
    %431 = vmatpush.msra.mxu0 %v154
    %432 = vmatpush.msra.mxu0 %v153
    %433 = vmatpush.msra.mxu0 %v152
    %434 = vmatpush.msra.mxu0 %v151
    %435 = vmatpush.msra.mxu0 %v150
    %436 = vmatpush.msra.mxu0 %v149
    %437 = vmatmul.f32.gmra.mxu0 %v59
    %v438 = vpop.f32.mrf.mxu0
    %v439 = vadd.f32 %v416, %v438
    %440 = vmatmul.f32.gmra.mxu0 %v74
    %v441 = vpop.f32.mrf.mxu0
    %v442 = vadd.f32 %v419, %v441
    %443 = vdwg.mxu0
    %444 = vmatpush.msra.mxu0 %v180
    %445 = vmatpush.msra.mxu0 %v179
    %446 = vmatpush.msra.mxu0 %v178
    %447 = vmatpush.msra.mxu0 %v177
    %448 = vmatpush.msra.mxu0 %v176
    %449 = vmatpush.msra.mxu0 %v175
    %450 = vmatpush.msra.mxu0 %v174
    %451 = vmatpush.msra.mxu0 %v173
    %452 = vmatpush.msra.mxu0 %v172
    %453 = vmatpush.msra.mxu0 %v171
    %454 = vmatpush.msra.mxu0 %v170
    %455 = vmatpush.msra.mxu0 %v169
    %456 = vmatpush.msra.mxu0 %v168
    %457 = vmatpush.msra.mxu0 %v167
    %458 = vmatpush.msra.mxu0 %v166
    %459 = vmatpush.msra.mxu0 %v165
    %460 = vmatmul.f32.gmra.mxu0 %v60
    %v461 = vpop.f32.mrf.mxu0
    %v462 = vadd.f32 %v439, %v461
    %463 = vmatmul.f32.gmra.mxu0 %v75
    %v464 = vpop.f32.mrf.mxu0
    %v465 = vadd.f32 %v442, %v464
    %466 = vdwg.mxu0
    %467 = vmatpush.msra.mxu0 %v196
    %468 = vmatpush.msra.mxu0 %v195
    %469 = vmatpush.msra.mxu0 %v194
    %470 = vmatpush.msra.mxu0 %v193
    %471 = vmatpush.msra.mxu0 %v192
    %472 = vmatpush.msra.mxu0 %v191
    %473 = vmatpush.msra.mxu0 %v190
    %474 = vmatpush.msra.mxu0 %v189
    %475 = vmatpush.msra.mxu0 %v188
    %476 = vmatpush.msra.mxu0 %v187
    %477 = vmatpush.msra.mxu0 %v186
    %478 = vmatpush.msra.mxu0 %v185
    %479 = vmatpush.msra.mxu0 %v184
    %480 = vmatpush.msra.mxu0 %v183
    %481 = vmatpush.msra.mxu0 %v182
    %482 = vmatpush.msra.mxu0 %v181
    %483 = vmatmul.f32.gmra.mxu0 %v61
    %v484 = vpop.f32.mrf.mxu0
    %v485 = vadd.f32 %v462, %v484
    %486 = vmatmul.f32.gmra.mxu0 %v76
    %v487 = vpop.f32.mrf.mxu0
    %v488 = vadd.f32 %v465, %v487
    %489 = vdwg.mxu0
    %490 = vmatpush.msra.mxu0 %v212
    %491 = vmatpush.msra.mxu0 %v211
    %492 = vmatpush.msra.mxu0 %v210
    %493 = vmatpush.msra.mxu0 %v209
    %494 = vmatpush.msra.mxu0 %v208
    %495 = vmatpush.msra.mxu0 %v207
    %496 = vmatpush.msra.mxu0 %v206
    %497 = vmatpush.msra.mxu0 %v205
    %498 = vmatpush.msra.mxu0 %v204
    %499 = vmatpush.msra.mxu0 %v203
    %500 = vmatpush.msra.mxu0 %v202
    %501 = vmatpush.msra.mxu0 %v201
    %502 = vmatpush.msra.mxu0 %v200
    %503 = vmatpush.msra.mxu0 %v199
    %504 = vmatpush.msra.mxu0 %v198
    %505 = vmatpush.msra.mxu0 %v197
    %506 = vmatmul.f32.gmra.mxu0 %v62
    %v507 = vpop.f32.mrf.mxu0
    %v508 = vadd.f32 %v485, %v507
    %509 = vmatmul.f32.gmra.mxu0 %v77
    %v510 = vpop.f32.mrf.mxu0
    %v511 = vadd.f32 %v488, %v510
    %512 = vdwg.mxu0
    %513 = vmatpush.msra.mxu0 %v228
    %514 = vmatpush.msra.mxu0 %v227
    %515 = vmatpush.msra.mxu0 %v226
    %516 = vmatpush.msra.mxu0 %v225
    %517 = vmatpush.msra.mxu0 %v224
    %518 = vmatpush.msra.mxu0 %v223
    %519 = vmatpush.msra.mxu0 %v222
    %520 = vmatpush.msra.mxu0 %v221
    %521 = vmatpush.msra.mxu0 %v220
    %522 = vmatpush.msra.mxu0 %v219
    %523 = vmatpush.msra.mxu0 %v218
    %524 = vmatpush.msra.mxu0 %v217
    %525 = vmatpush.msra.mxu0 %v216
    %526 = vmatpush.msra.mxu0 %v215
    %527 = vmatpush.msra.mxu0 %v214
    %528 = vmatpush.msra.mxu0 %v213
    %529 = vmatmul.f32.gmra.mxu0 %v63
    %v530 = vpop.f32.mrf.mxu0
    %v531 = vadd.f32 %v508, %v530
    %532 = vmatmul.f32.gmra.mxu0 %v78
    %v533 = vpop.f32.mrf.mxu0
    %v534 = vadd.f32 %v511, %v533
    %535 = vdwg.mxu0
    %536 = vmatpush.msra.mxu0 %v244
    %537 = vmatpush.msra.mxu0 %v243
    %538 = vmatpush.msra.mxu0 %v242
    %539 = vmatpush.msra.mxu0 %v241
    %540 = vmatpush.msra.mxu0 %v240
    %541 = vmatpush.msra.mxu0 %v239
    %542 = vmatpush.msra.mxu0 %v238
    %543 = vmatpush.msra.mxu0 %v237
    %544 = vmatpush.msra.mxu0 %v236
    %545 = vmatpush.msra.mxu0 %v235
    %546 = vmatpush.msra.mxu0 %v234
    %547 = vmatpush.msra.mxu0 %v233
    %548 = vmatpush.msra.mxu0 %v232
    %549 = vmatpush.msra.mxu0 %v231
    %550 = vmatpush.msra.mxu0 %v230
    %551 = vmatpush.msra.mxu0 %v229
    %552 = vmatmul.f32.gmra.mxu0 %v64
    %v553 = vpop.f32.mrf.mxu0
    %v554 = vadd.f32 %v531, %v553
    %555 = vmatmul.f32.gmra.mxu0 %v79
    %v556 = vpop.f32.mrf.mxu0
    %v557 = vadd.f32 %v534, %v556
    %558 = vdwg.mxu0
    %559 = vmatpush.msra.mxu0 %v260
    %560 = vmatpush.msra.mxu0 %v259
    %561 = vmatpush.msra.mxu0 %v258
    %562 = vmatpush.msra.mxu0 %v257
    %563 = vmatpush.msra.mxu0 %v256
    %564 = vmatpush.msra.mxu0 %v255
    %565 = vmatpush.msra.mxu0 %v254
    %566 = vmatpush.msra.mxu0 %v253
    %567 = vmatpush.msra.mxu0 %v252
    %568 = vmatpush.msra.mxu0 %v251
    %569 = vmatpush.msra.mxu0 %v250
    %570 = vmatpush.msra.mxu0 %v249
    %571 = vmatpush.msra.mxu0 %v248
    %572 = vmatpush.msra.mxu0 %v247
    %573 = vmatpush.msra.mxu0 %v246
    %574 = vmatpush.msra.mxu0 %v245
    %575 = vmatmul.f32.gmra.mxu0 %v65
    %v576 = vpop.f32.mrf.mxu0
    %v577 = vadd.f32 %v554, %v576
    %578 = vmatmul.f32.gmra.mxu0 %v80
    %v579 = vpop.f32.mrf.mxu0
    %v580 = vadd.f32 %v557, %v579
    %581 = vdwg.mxu0
    %582 = vmatpush.msra.mxu0 %v276
    %583 = vmatpush.msra.mxu0 %v275
    %584 = vmatpush.msra.mxu0 %v274
    %585 = vmatpush.msra.mxu0 %v273
    %586 = vmatpush.msra.mxu0 %v272
    %587 = vmatpush.msra.mxu0 %v271
    %588 = vmatpush.msra.mxu0 %v270
    %589 = vmatpush.msra.mxu0 %v269
    %590 = vmatpush.msra.mxu0 %v268
    %591 = vmatpush.msra.mxu0 %v267
    %592 = vmatpush.msra.mxu0 %v266
    %593 = vmatpush.msra.mxu0 %v265
    %594 = vmatpush.msra.mxu0 %v264
    %595 = vmatpush.msra.mxu0 %v263
    %596 = vmatpush.msra.mxu0 %v262
    %597 = vmatpush.msra.mxu0 %v261
    %598 = vmatmul.f32.gmra.mxu0 %v66
    %v599 = vpop.f32.mrf.mxu0
    %v600 = vadd.f32 %v577, %v599
    %601 = vmatmul.f32.gmra.mxu0 %v81
    %v602 = vpop.f32.mrf.mxu0
    %v603 = vadd.f32 %v580, %v602
    %604 = vdwg.mxu0
    %605 = vmatpush.msra.mxu0 %v292
    %606 = vmatpush.msra.mxu0 %v291
    %607 = vmatpush.msra.mxu0 %v290
    %608 = vmatpush.msra.mxu0 %v289
    %609 = vmatpush.msra.mxu0 %v288
    %610 = vmatpush.msra.mxu0 %v287
    %611 = vmatpush.msra.mxu0 %v286
    %612 = vmatpush.msra.mxu0 %v285
    %613 = vmatpush.msra.mxu0 %v284
    %614 = vmatpush.msra.mxu0 %v283
    %615 = vmatpush.msra.mxu0 %v282
    %616 = vmatpush.msra.mxu0 %v281
    %617 = vmatpush.msra.mxu0 %v280
    %618 = vmatpush.msra.mxu0 %v279
    %619 = vmatpush.msra.mxu0 %v278
    %620 = vmatpush.msra.mxu0 %v277
    %621 = vmatmul.f32.gmra.mxu0 %v67
    %v622 = vpop.f32.mrf.mxu0
    %v623 = vadd.f32 %v600, %v622
    %624 = vmatmul.f32.gmra.mxu0 %v82
    %v625 = vpop.f32.mrf.mxu0
    %v626 = vadd.f32 %v603, %v625
    %627 = vdwg.mxu0
    %628 = vmatpush.msra.mxu0 %v308
    %629 = vmatpush.msra.mxu0 %v307
    %630 = vmatpush.msra.mxu0 %v306
    %631 = vmatpush.msra.mxu0 %v305
    %632 = vmatpush.msra.mxu0 %v304
    %633 = vmatpush.msra.mxu0 %v303
    %634 = vmatpush.msra.mxu0 %v302
    %635 = vmatpush.msra.mxu0 %v301
    %636 = vmatpush.msra.mxu0 %v300
    %637 = vmatpush.msra.mxu0 %v299
    %638 = vmatpush.msra.mxu0 %v298
    %639 = vmatpush.msra.mxu0 %v297
    %640 = vmatpush.msra.mxu0 %v296
    %641 = vmatpush.msra.mxu0 %v295
    %642 = vmatpush.msra.mxu0 %v294
    %643 = vmatpush.msra.mxu0 %v293
    %644 = vmatmul.f32.gmra.mxu0 %v68
    %v645 = vpop.f32.mrf.mxu0
    %v646 = vadd.f32 %v623, %v645
    %647 = vmatmul.f32.gmra.mxu0 %v83
    %v648 = vpop.f32.mrf.mxu0
    %v649 = vadd.f32 %v626, %v648
    %650 = vdwg.mxu0
    %651 = vmatpush.msra.mxu0 %v324
    %652 = vmatpush.msra.mxu0 %v323
    %653 = vmatpush.msra.mxu0 %v322
    %654 = vmatpush.msra.mxu0 %v321
    %655 = vmatpush.msra.mxu0 %v320
    %656 = vmatpush.msra.mxu0 %v319
    %657 = vmatpush.msra.mxu0 %v318
    %658 = vmatpush.msra.mxu0 %v317
    %659 = vmatpush.msra.mxu0 %v316
    %660 = vmatpush.msra.mxu0 %v315
    %661 = vmatpush.msra.mxu0 %v314
    %662 = vmatpush.msra.mxu0 %v313
    %663 = vmatpush.msra.mxu0 %v312
    %664 = vmatpush.msra.mxu0 %v311
    %665 = vmatpush.msra.mxu0 %v310
    %666 = vmatpush.msra.mxu0 %v309
    %667 = vmatmul.f32.gmra.mxu0 %v69
    %v668 = vpop.f32.mrf.mxu0
    %v669 = vadd.f32 %v646, %v668
    %670 = vmatmul.f32.gmra.mxu0 %v84
    %v671 = vpop.f32.mrf.mxu0
    %v672 = vadd.f32 %v649, %v671
    %673 = vdwg.mxu0
    %v674 = vmax.f32 %v669, 0.0
    %v675 = vmax.f32 %v672, 0.0
    %v676 = vld [vmem:[%s3] sm:$0x1]
    %v678 = vperm.slane %v676, 0
    %v680 = vmul.f32 %v674, %v678
    %v681 = vmul.f32 %v675, %v678
    %682 = vadd.xlane.f32.xlu0 %v680
    %v683 = vpop.xlane.xlu0 %682
    %684 = vadd.xlane.f32.xlu0 %v681
    %v685 = vpop.xlane.xlu0 %684
    %v686 = vld [vmem:[#allocation2] sm:$0x1]
    %v688 = vperm.slane %v686, 0
    %v690 = vadd.f32 %v683, %v688
    %v691 = vadd.f32 %v685, %v688
    %v692 = vsub.f32 0.0, %v690
    %v693 = vsub.f32 0.0, %v691
    %v694 = vmul.f32 %v692, 1.442695
    %v695 = vpow.pop %v694
    %v696 = vmul.f32 %v693, 1.442695
    %v697 = vpow.pop %v696
    %v698 = vadd.f32 %v695, 1.0
    %v699 = vadd.f32 %v697, 1.0
    %v700 = vrcp.pop %v698
    %v701 = vmul.f32 %v698, %v700
    %v702 = vsub.f32 1.0, %v701
    %v703 = vmul.f32 %v700, %v702
    %v704 = vadd.f32 %v700, %v703
    %vm705 = vweird.f32 %v698
    %vm706 = vweird.f32 %v700
    %vm707 = vmor %vm705, %vm706
    %v708 = vsel %vm707, %v700, %v704
    %v709 = vand.u32 2147483647, %v698
    %vm710 = vcmp.eq.f32.partialorder %v709, 8.507059e+37
    %v711 = vand.u32 %v698, 2147483648
    %v712 = vor.u32 1.1754944e-38, %v711
    %v713 = vsel %vm710, %v712, %v708
    %v714 = vmul.f32 1.0, %v713
    %v715 = vrcp.pop %v699
    %v716 = vmul.f32 %v699, %v715
    %v717 = vsub.f32 1.0, %v716
    %v718 = vmul.f32 %v715, %v717
    %v719 = vadd.f32 %v715, %v718
    %vm720 = vweird.f32 %v699
    %vm721 = vweird.f32 %v715
    %vm722 = vmor %vm720, %vm721
    %v723 = vsel %vm722, %v715, %v719
    %v724 = vand.u32 2147483647, %v699
    %vm725 = vcmp.eq.f32.partialorder %v724, 8.507059e+37
    %v726 = vand.u32 %v699, 2147483648
    %v727 = vor.u32 1.1754944e-38, %v726
    %v728 = vsel %vm725, %v727, %v723
    %v729 = vmul.f32 1.0, %v728
    %731 = vset.pattern.permute.xlu0 0
    %732 = vperm.xlu0 %731, %v714
    %v733 = vpop.permute.xlu0 %732
    %736 = vset.pattern.permute.xlu0 0
    %737 = vperm.xlu0 %736, %v729
    %v738 = vpop.permute.xlu0 %737
    %740 = vst [vmem:[#allocation8] sm:$0xff] %v733
    %741 = vst [vmem:[#allocation8 + $0x8] sm:$0xff] %v738
    // Predicated region
    $region30: #{tpu_custom_call.1} parent=1 // pred_check
      _
    $region31: #{tpu_custom_call.1} parent=1 // pred_check_branch
      %743 = sbr.rel (0) target = $region33
    $region32: #{tpu_custom_call.1} parent=1 // pred_region
      %745 = vsyncadd [#allocation5], 0
      %s746 = sshll.u32 [#allocation8], 4
      %s747 = int_to_ptr.vmem [resolvable:$true] %s746
      %s748 = sshll.u32 %s5, 4
      %s749 = int_to_ptr.hbm [resolvable:$true] %s748
      %754 = dma.vmem_to_hbm [thread:$0]  %s747, 256, %s749, [#allocation5], 128, 128, 8
    $region33: #{tpu_custom_call.1} parent=1 // pred_fallthru
      _
    // Predicated region
    $region34: #{tpu_custom_call.1} parent=1 // pred_check
      _
    $region35: #{tpu_custom_call.1} parent=1 // pred_check_branch
      %756 = sbr.rel (0) target = $region37
    $region36: #{tpu_custom_call.1} parent=1 // pred_region
      %758 = dma.done [#allocation5], 256
    $region37: #{tpu_custom_call.1} parent=1 // pred_fallthru
      _
    %759 = vsyncpa [#allocation4], 1
    %760 = vsyncpa [#allocation7], 1
    %761 = vsyncpa [#allocation5], 1

</llo_original>
